<compile_context>
chip_gen: v5e
topology: v5e:2x2
jax: 0.10.0
libtpu: 0.0.40
codegen_flags: <defaults>
</compile_context>

<pallas_src>
import jax
import jax.numpy as jnp
from jax.experimental import pallas as pl
from jax.experimental.pallas import tpu as pltpu

EPS = 1e-5
NEG_SLOPE = 0.2
FEATURES = [4, 8, 16, 29]     # per-block output widths from Generator.__init__
N_LAYERS = len(FEATURES)
PAD = 128                     # lane width: every feature axis padded to this


def generator_kernel(x_ref, w_ref, bn_ref, out_ref):
    """x:(N,128)  w:(4,128,128)  bn:(8,128) [gamma rows 0..3, beta rows 4..7]."""
    inv_n = jnp.float32(1.0 / x_ref.shape[0])
    h = x_ref[...]
    for k in range(N_LAYERS):                       # unrolled at trace time
        # Linear (bias folded away by the batch-mean subtraction below).
        y = jnp.dot(h, w_ref[k], preferred_element_type=jnp.float32)
        # BatchNorm1d, training-mode batch statistics (biased variance),
        # one pass over the data: E[y] and E[y^2].
        mean = jnp.sum(y, axis=0, keepdims=True) * inv_n
        mean_sq = jnp.sum(y * y, axis=0, keepdims=True) * inv_n
        var = jnp.maximum(mean_sq - mean * mean, 0.0)
        gamma = bn_ref[k:k + 1, :]                  # (1, 128), static slice
        beta = bn_ref[N_LAYERS + k:N_LAYERS + k + 1, :]
        scale = gamma * jax.lax.rsqrt(var + EPS)    # gamma fused into scale
        shift = beta - mean * scale
        y = y * scale + shift
        # LeakyReLU(0.2).  Padded lanes stay exactly 0 (gamma = beta = 0).
        h = jnp.where(y > 0, y, NEG_SLOPE * y)
    out_ref[...] = h.astype(out_ref.dtype)


def _full_spec(shape):
    # Whole array resident in VMEM as a single block (all operands are tiny).
    return pl.BlockSpec(shape, lambda: tuple(0 for _ in shape))


@jax.jit
def generator_forward(noise, w_slab, bn_slab):
    n, latent = noise.shape
    # Lane-dense input slab: pad the latent axis to 128 with zeros.
    x = jnp.pad(noise.astype(jnp.float32), ((0, 0), (0, PAD - latent)))
    out = pl.pallas_call(
        generator_kernel,
        out_shape=jax.ShapeDtypeStruct((n, PAD), jnp.float32),
        grid=(),
        in_specs=[_full_spec((n, PAD)),
                  _full_spec((N_LAYERS, PAD, PAD)),
                  _full_spec((2 * N_LAYERS, PAD))],
        out_specs=_full_spec((n, PAD)),
        compiler_params=pltpu.CompilerParams(
            vmem_limit_bytes=32 * 1024 * 1024),
    )(x, w_slab, bn_slab)
    # Lane-dense (N, 128) store inside the kernel; slice to 29 features here.
    return out[:, :FEATURES[-1]]


def pack_params(params):
    """Pack per-layer (W^T (in,out), b, gamma, beta) into two lane-dense slabs.

    The Linear bias is intentionally dropped: training-mode BatchNorm1d
    subtracts the per-feature batch mean immediately after the affine, so a
    constant per-feature bias cancels exactly.
    """
    w_slab = jnp.zeros((N_LAYERS, PAD, PAD), jnp.float32)
    bn_slab = jnp.zeros((2 * N_LAYERS, PAD), jnp.float32)
    for k, (w, _b, gamma, beta) in enumerate(params):
        i, o = w.shape
        w_slab = w_slab.at[k, :i, :o].set(w)
        bn_slab = bn_slab.at[k, :o].set(gamma.reshape(-1))
        bn_slab = bn_slab.at[N_LAYERS + k, :o].set(beta.reshape(-1))
    return w_slab, bn_slab


def init_params(key, input_shape):
    """Deterministic synthetic parameters matching the module's shapes."""
    params = []
    in_feat = input_shape
    for out_feat in FEATURES:
        key, kw, kb, kg, kbe = jax.random.split(key, 5)
        bound = 1.0 / jnp.sqrt(in_feat)
        # Linear weight stored already transposed: (in, out).
        w_t = jax.random.uniform(kw, (in_feat, out_feat), jnp.float32,
                                 minval=-bound, maxval=bound)
        b = jax.random.uniform(kb, (1, out_feat), jnp.float32,
                               minval=-bound, maxval=bound)
        gamma = 1.0 + 0.1 * jax.random.normal(kg, (1, out_feat), jnp.float32)
        beta = 0.1 * jax.random.normal(kbe, (1, out_feat), jnp.float32)
        params.append((w_t, b, gamma, beta))
        in_feat = out_feat
    return params


def generator_reference(noise, params):
    """Module-faithful plain-JAX reference (keeps Linear bias, two-pass BN)."""
    h = noise.astype(jnp.float32)
    for (w, b, g, be) in params:
        y = h @ w + b
        mean = jnp.mean(y, axis=0, keepdims=True)
        var = jnp.mean(jnp.square(y - mean), axis=0, keepdims=True)
        y = (y - mean) / jnp.sqrt(var + EPS) * g + be
        h = jnp.where(y > 0, y, NEG_SLOPE * y)
    return h


def generator_reference_packed(noise, w_slab, bn_slab):
    """Plain-JAX mirror of the kernel's math (packed, no bias, one-pass BN)."""
    n, latent = noise.shape
    h = jnp.pad(noise.astype(jnp.float32), ((0, 0), (0, PAD - latent)))
    for k in range(N_LAYERS):
        y = h @ w_slab[k]
        mean = jnp.mean(y, axis=0, keepdims=True)
        mean_sq = jnp.mean(y * y, axis=0, keepdims=True)
        var = jnp.maximum(mean_sq - mean * mean, 0.0)
        scale = bn_slab[k:k + 1, :] * jax.lax.rsqrt(var + EPS)
        shift = bn_slab[N_LAYERS + k:N_LAYERS + k + 1, :] - mean * scale
        y = y * scale + shift
        h = jnp.where(y > 0, y, NEG_SLOPE * y)
    return h[:, :FEATURES[-1]]


if __name__ == "__main__":
    key = jax.random.PRNGKey(0)
    k_noise, k_params = jax.random.split(key)

    input_shape = 16   # latent (noise) dimension
    batch = 8

    noise = jax.random.normal(k_noise, (batch, input_shape), jnp.float32)
    params = init_params(k_params, input_shape)
    w_slab, bn_slab = pack_params(params)

    out = generator_forward(noise, w_slab, bn_slab)
    out = jax.block_until_ready(out)
    assert out.shape == (batch, FEATURES[-1])

    # (1) Tight check against a plain-JAX mirror of the kernel's exact math
    #     (packed slabs, bias folded out, one-pass statistics).
    ref_packed = generator_reference_packed(noise, w_slab, bn_slab)
    assert jnp.allclose(out, ref_packed, atol=1e-4, rtol=1e-4)

    # (2) Check against the module-faithful reference (Linear bias kept,
    #     two-pass variance).  The bias fold and one-pass variance are exact
    #     in real arithmetic; the slightly looser tolerance only absorbs fp
    #     rounding amplified through the four BatchNorm layers.
    ref = generator_reference(noise, params)
    assert jnp.allclose(out, ref, atol=1e-3, rtol=1e-3)

    print("KERNEL_OK")
</pallas_src>

<mosaic_0001>
module attributes {stable_mosaic.version = 11 : i64} {
  func.func @generator_kernel(%arg0: memref<8x128xf32, #tpu.memory_space<vmem>>, %arg1: memref<4x128x128xf32, #tpu.memory_space<vmem>>, %arg2: memref<8x128xf32, #tpu.memory_space<vmem>>, %arg3: memref<8x128xf32, #tpu.memory_space<vmem>>) attributes {dimension_semantics = [], scalar_prefetch = 0 : i64, scratch_operands = 0 : i64, tpu.core_type = #tpu.core_type<tc>} {
    %c0 = arith.constant 0 : index
    %c0_0 = arith.constant 0 : index
    %0 = vector.load %arg0[%c0, %c0_0] : memref<8x128xf32, #tpu.memory_space<vmem>>, vector<8x128xf32>
    %c0_1 = arith.constant 0 : index
    %c0_2 = arith.constant 0 : index
    %c0_3 = arith.constant 0 : index
    %1 = vector.load %arg1[%c0_1, %c0_2, %c0_3] : memref<4x128x128xf32, #tpu.memory_space<vmem>>, vector<1x128x128xf32>
    %2 = vector.shape_cast %1 : vector<1x128x128xf32> to vector<128x128xf32>
    %cst = arith.constant dense<0.000000e+00> : vector<8x128xf32>
    %3 = tpu.matmul %0, %2, %cst {dimension_numbers = #tpu.dot_dimension_numbers<[1], [0], [0], [1], [0, 0, 1, 1], [], []>} : vector<8x128xf32>, vector<128x128xf32>, vector<8x128xf32> -> vector<8x128xf32>
    %cst_4 = arith.constant dense<0.000000e+00> : vector<128xf32>
    %4 = vector.multi_reduction <add>, %3, %cst_4 [0] : vector<8x128xf32> to vector<128xf32>
    %5 = vector.shape_cast %4 : vector<128xf32> to vector<1x128xf32>
    %cst_5 = arith.constant 1.250000e-01 : f32
    %6 = vector.broadcast %cst_5 : f32 to vector<1x128xf32>
    %7 = arith.mulf %5, %6 : vector<1x128xf32>
    %8 = arith.mulf %3, %3 : vector<8x128xf32>
    %cst_6 = arith.constant dense<0.000000e+00> : vector<128xf32>
    %9 = vector.multi_reduction <add>, %8, %cst_6 [0] : vector<8x128xf32> to vector<128xf32>
    %10 = vector.shape_cast %9 : vector<128xf32> to vector<1x128xf32>
    %cst_7 = arith.constant 1.250000e-01 : f32
    %11 = vector.broadcast %cst_7 : f32 to vector<1x128xf32>
    %12 = arith.mulf %10, %11 : vector<1x128xf32>
    %13 = arith.mulf %7, %7 : vector<1x128xf32>
    %14 = arith.subf %12, %13 : vector<1x128xf32>
    %cst_8 = arith.constant 0.000000e+00 : f32
    %15 = vector.broadcast %cst_8 : f32 to vector<1x128xf32>
    %16 = arith.maximumf %14, %15 : vector<1x128xf32>
    %c0_9 = arith.constant 0 : index
    %c0_10 = arith.constant 0 : index
    %17 = vector.load %arg2[%c0_9, %c0_10] : memref<8x128xf32, #tpu.memory_space<vmem>>, vector<1x128xf32>
    %c4 = arith.constant 4 : index
    %c0_11 = arith.constant 0 : index
    %18 = vector.load %arg2[%c4, %c0_11] : memref<8x128xf32, #tpu.memory_space<vmem>>, vector<1x128xf32>
    %cst_12 = arith.constant 9.99999974E-6 : f32
    %19 = vector.broadcast %cst_12 : f32 to vector<1x128xf32>
    %20 = arith.addf %16, %19 : vector<1x128xf32>
    %21 = math.rsqrt %20 : vector<1x128xf32>
    %22 = arith.mulf %17, %21 : vector<1x128xf32>
    %23 = arith.mulf %7, %22 : vector<1x128xf32>
    %24 = arith.subf %18, %23 : vector<1x128xf32>
    %25 = vector.broadcast %22 : vector<1x128xf32> to vector<8x128xf32>
    %26 = arith.mulf %3, %25 : vector<8x128xf32>
    %27 = vector.broadcast %24 : vector<1x128xf32> to vector<8x128xf32>
    %28 = arith.addf %26, %27 : vector<8x128xf32>
    %cst_13 = arith.constant 0.000000e+00 : f32
    %29 = vector.broadcast %cst_13 : f32 to vector<8x128xf32>
    %30 = arith.cmpf ogt, %28, %29 : vector<8x128xf32>
    %cst_14 = arith.constant 2.000000e-01 : f32
    %31 = vector.broadcast %cst_14 : f32 to vector<8x128xf32>
    %32 = arith.mulf %31, %28 : vector<8x128xf32>
    %33 = arith.select %30, %28, %32 : vector<8x128xi1>, vector<8x128xf32>
    %c1 = arith.constant 1 : index
    %c0_15 = arith.constant 0 : index
    %c0_16 = arith.constant 0 : index
    %34 = vector.load %arg1[%c1, %c0_15, %c0_16] : memref<4x128x128xf32, #tpu.memory_space<vmem>>, vector<1x128x128xf32>
    %35 = vector.shape_cast %34 : vector<1x128x128xf32> to vector<128x128xf32>
    %cst_17 = arith.constant dense<0.000000e+00> : vector<8x128xf32>
    %36 = tpu.matmul %33, %35, %cst_17 {dimension_numbers = #tpu.dot_dimension_numbers<[1], [0], [0], [1], [0, 0, 1, 1], [], []>} : vector<8x128xf32>, vector<128x128xf32>, vector<8x128xf32> -> vector<8x128xf32>
    %cst_18 = arith.constant dense<0.000000e+00> : vector<128xf32>
    %37 = vector.multi_reduction <add>, %36, %cst_18 [0] : vector<8x128xf32> to vector<128xf32>
    %38 = vector.shape_cast %37 : vector<128xf32> to vector<1x128xf32>
    %cst_19 = arith.constant 1.250000e-01 : f32
    %39 = vector.broadcast %cst_19 : f32 to vector<1x128xf32>
    %40 = arith.mulf %38, %39 : vector<1x128xf32>
    %41 = arith.mulf %36, %36 : vector<8x128xf32>
    %cst_20 = arith.constant dense<0.000000e+00> : vector<128xf32>
    %42 = vector.multi_reduction <add>, %41, %cst_20 [0] : vector<8x128xf32> to vector<128xf32>
    %43 = vector.shape_cast %42 : vector<128xf32> to vector<1x128xf32>
    %cst_21 = arith.constant 1.250000e-01 : f32
    %44 = vector.broadcast %cst_21 : f32 to vector<1x128xf32>
    %45 = arith.mulf %43, %44 : vector<1x128xf32>
    %46 = arith.mulf %40, %40 : vector<1x128xf32>
    %47 = arith.subf %45, %46 : vector<1x128xf32>
    %cst_22 = arith.constant 0.000000e+00 : f32
    %48 = vector.broadcast %cst_22 : f32 to vector<1x128xf32>
    %49 = arith.maximumf %47, %48 : vector<1x128xf32>
    %c1_23 = arith.constant 1 : index
    %c0_24 = arith.constant 0 : index
    %50 = vector.load %arg2[%c1_23, %c0_24] : memref<8x128xf32, #tpu.memory_space<vmem>>, vector<1x128xf32>
    %c5 = arith.constant 5 : index
    %c0_25 = arith.constant 0 : index
    %51 = vector.load %arg2[%c5, %c0_25] : memref<8x128xf32, #tpu.memory_space<vmem>>, vector<1x128xf32>
    %cst_26 = arith.constant 9.99999974E-6 : f32
    %52 = vector.broadcast %cst_26 : f32 to vector<1x128xf32>
    %53 = arith.addf %49, %52 : vector<1x128xf32>
    %54 = math.rsqrt %53 : vector<1x128xf32>
    %55 = arith.mulf %50, %54 : vector<1x128xf32>
    %56 = arith.mulf %40, %55 : vector<1x128xf32>
    %57 = arith.subf %51, %56 : vector<1x128xf32>
    %58 = vector.broadcast %55 : vector<1x128xf32> to vector<8x128xf32>
    %59 = arith.mulf %36, %58 : vector<8x128xf32>
    %60 = vector.broadcast %57 : vector<1x128xf32> to vector<8x128xf32>
    %61 = arith.addf %59, %60 : vector<8x128xf32>
    %cst_27 = arith.constant 0.000000e+00 : f32
    %62 = vector.broadcast %cst_27 : f32 to vector<8x128xf32>
    %63 = arith.cmpf ogt, %61, %62 : vector<8x128xf32>
    %cst_28 = arith.constant 2.000000e-01 : f32
    %64 = vector.broadcast %cst_28 : f32 to vector<8x128xf32>
    %65 = arith.mulf %64, %61 : vector<8x128xf32>
    %66 = arith.select %63, %61, %65 : vector<8x128xi1>, vector<8x128xf32>
    %c2 = arith.constant 2 : index
    %c0_29 = arith.constant 0 : index
    %c0_30 = arith.constant 0 : index
    %67 = vector.load %arg1[%c2, %c0_29, %c0_30] : memref<4x128x128xf32, #tpu.memory_space<vmem>>, vector<1x128x128xf32>
    %68 = vector.shape_cast %67 : vector<1x128x128xf32> to vector<128x128xf32>
    %cst_31 = arith.constant dense<0.000000e+00> : vector<8x128xf32>
    %69 = tpu.matmul %66, %68, %cst_31 {dimension_numbers = #tpu.dot_dimension_numbers<[1], [0], [0], [1], [0, 0, 1, 1], [], []>} : vector<8x128xf32>, vector<128x128xf32>, vector<8x128xf32> -> vector<8x128xf32>
    %cst_32 = arith.constant dense<0.000000e+00> : vector<128xf32>
    %70 = vector.multi_reduction <add>, %69, %cst_32 [0] : vector<8x128xf32> to vector<128xf32>
    %71 = vector.shape_cast %70 : vector<128xf32> to vector<1x128xf32>
    %cst_33 = arith.constant 1.250000e-01 : f32
    %72 = vector.broadcast %cst_33 : f32 to vector<1x128xf32>
    %73 = arith.mulf %71, %72 : vector<1x128xf32>
    %74 = arith.mulf %69, %69 : vector<8x128xf32>
    %cst_34 = arith.constant dense<0.000000e+00> : vector<128xf32>
    %75 = vector.multi_reduction <add>, %74, %cst_34 [0] : vector<8x128xf32> to vector<128xf32>
    %76 = vector.shape_cast %75 : vector<128xf32> to vector<1x128xf32>
    %cst_35 = arith.constant 1.250000e-01 : f32
    %77 = vector.broadcast %cst_35 : f32 to vector<1x128xf32>
    %78 = arith.mulf %76, %77 : vector<1x128xf32>
    %79 = arith.mulf %73, %73 : vector<1x128xf32>
    %80 = arith.subf %78, %79 : vector<1x128xf32>
    %cst_36 = arith.constant 0.000000e+00 : f32
    %81 = vector.broadcast %cst_36 : f32 to vector<1x128xf32>
    %82 = arith.maximumf %80, %81 : vector<1x128xf32>
    %c2_37 = arith.constant 2 : index
    %c0_38 = arith.constant 0 : index
    %83 = vector.load %arg2[%c2_37, %c0_38] : memref<8x128xf32, #tpu.memory_space<vmem>>, vector<1x128xf32>
    %c6 = arith.constant 6 : index
    %c0_39 = arith.constant 0 : index
    %84 = vector.load %arg2[%c6, %c0_39] : memref<8x128xf32, #tpu.memory_space<vmem>>, vector<1x128xf32>
    %cst_40 = arith.constant 9.99999974E-6 : f32
    %85 = vector.broadcast %cst_40 : f32 to vector<1x128xf32>
    %86 = arith.addf %82, %85 : vector<1x128xf32>
    %87 = math.rsqrt %86 : vector<1x128xf32>
    %88 = arith.mulf %83, %87 : vector<1x128xf32>
    %89 = arith.mulf %73, %88 : vector<1x128xf32>
    %90 = arith.subf %84, %89 : vector<1x128xf32>
    %91 = vector.broadcast %88 : vector<1x128xf32> to vector<8x128xf32>
    %92 = arith.mulf %69, %91 : vector<8x128xf32>
    %93 = vector.broadcast %90 : vector<1x128xf32> to vector<8x128xf32>
    %94 = arith.addf %92, %93 : vector<8x128xf32>
    %cst_41 = arith.constant 0.000000e+00 : f32
    %95 = vector.broadcast %cst_41 : f32 to vector<8x128xf32>
    %96 = arith.cmpf ogt, %94, %95 : vector<8x128xf32>
    %cst_42 = arith.constant 2.000000e-01 : f32
    %97 = vector.broadcast %cst_42 : f32 to vector<8x128xf32>
    %98 = arith.mulf %97, %94 : vector<8x128xf32>
    %99 = arith.select %96, %94, %98 : vector<8x128xi1>, vector<8x128xf32>
    %c3 = arith.constant 3 : index
    %c0_43 = arith.constant 0 : index
    %c0_44 = arith.constant 0 : index
    %100 = vector.load %arg1[%c3, %c0_43, %c0_44] : memref<4x128x128xf32, #tpu.memory_space<vmem>>, vector<1x128x128xf32>
    %101 = vector.shape_cast %100 : vector<1x128x128xf32> to vector<128x128xf32>
    %cst_45 = arith.constant dense<0.000000e+00> : vector<8x128xf32>
    %102 = tpu.matmul %99, %101, %cst_45 {dimension_numbers = #tpu.dot_dimension_numbers<[1], [0], [0], [1], [0, 0, 1, 1], [], []>} : vector<8x128xf32>, vector<128x128xf32>, vector<8x128xf32> -> vector<8x128xf32>
    %cst_46 = arith.constant dense<0.000000e+00> : vector<128xf32>
    %103 = vector.multi_reduction <add>, %102, %cst_46 [0] : vector<8x128xf32> to vector<128xf32>
    %104 = vector.shape_cast %103 : vector<128xf32> to vector<1x128xf32>
    %cst_47 = arith.constant 1.250000e-01 : f32
    %105 = vector.broadcast %cst_47 : f32 to vector<1x128xf32>
    %106 = arith.mulf %104, %105 : vector<1x128xf32>
    %107 = arith.mulf %102, %102 : vector<8x128xf32>
    %cst_48 = arith.constant dense<0.000000e+00> : vector<128xf32>
    %108 = vector.multi_reduction <add>, %107, %cst_48 [0] : vector<8x128xf32> to vector<128xf32>
    %109 = vector.shape_cast %108 : vector<128xf32> to vector<1x128xf32>
    %cst_49 = arith.constant 1.250000e-01 : f32
    %110 = vector.broadcast %cst_49 : f32 to vector<1x128xf32>
    %111 = arith.mulf %109, %110 : vector<1x128xf32>
    %112 = arith.mulf %106, %106 : vector<1x128xf32>
    %113 = arith.subf %111, %112 : vector<1x128xf32>
    %cst_50 = arith.constant 0.000000e+00 : f32
    %114 = vector.broadcast %cst_50 : f32 to vector<1x128xf32>
    %115 = arith.maximumf %113, %114 : vector<1x128xf32>
    %c3_51 = arith.constant 3 : index
    %c0_52 = arith.constant 0 : index
    %116 = vector.load %arg2[%c3_51, %c0_52] : memref<8x128xf32, #tpu.memory_space<vmem>>, vector<1x128xf32>
    %c7 = arith.constant 7 : index
    %c0_53 = arith.constant 0 : index
    %117 = vector.load %arg2[%c7, %c0_53] : memref<8x128xf32, #tpu.memory_space<vmem>>, vector<1x128xf32>
    %cst_54 = arith.constant 9.99999974E-6 : f32
    %118 = vector.broadcast %cst_54 : f32 to vector<1x128xf32>
    %119 = arith.addf %115, %118 : vector<1x128xf32>
    %120 = math.rsqrt %119 : vector<1x128xf32>
    %121 = arith.mulf %116, %120 : vector<1x128xf32>
    %122 = arith.mulf %106, %121 : vector<1x128xf32>
    %123 = arith.subf %117, %122 : vector<1x128xf32>
    %124 = vector.broadcast %121 : vector<1x128xf32> to vector<8x128xf32>
    %125 = arith.mulf %102, %124 : vector<8x128xf32>
    %126 = vector.broadcast %123 : vector<1x128xf32> to vector<8x128xf32>
    %127 = arith.addf %125, %126 : vector<8x128xf32>
    %cst_55 = arith.constant 0.000000e+00 : f32
    %128 = vector.broadcast %cst_55 : f32 to vector<8x128xf32>
    %129 = arith.cmpf ogt, %127, %128 : vector<8x128xf32>
    %cst_56 = arith.constant 2.000000e-01 : f32
    %130 = vector.broadcast %cst_56 : f32 to vector<8x128xf32>
    %131 = arith.mulf %130, %127 : vector<8x128xf32>
    %132 = arith.select %129, %127, %131 : vector<8x128xi1>, vector<8x128xf32>
    %c0_57 = arith.constant 0 : index
    %c0_58 = arith.constant 0 : index
    %133 = vector.load %arg3[%c0_57, %c0_58] : memref<8x128xf32, #tpu.memory_space<vmem>>, vector<8x128xf32>
    tpu.vector_store %arg3[%c0_57, %c0_58], %132 {strides = array<i32>} : memref<8x128xf32, #tpu.memory_space<vmem>>, vector<8x128xf32>,
    return
  }
}

</mosaic_0001>

<llo_original>
// kernel: generator_forward.1
$region0: #{generator_forward.1}
  #allocation0 [shape = 'u32[]', space=smem, size = 0x4, offset = 0x4, fixed_abs, tag = 'smem constant byte address 0x4 - core index']
  #allocation1 [shape = 'u32[72,128]{1,0:T(1,128)}', space=vmem, size = 0x9000, scoped, tag = 'internal scratch']
  %s0 = inlined_call_operand.vmem [shape: f32[8,128], index: 0, kind: input, shape index: {}]
  %s1 = inlined_call_operand.hbm [shape: f32[4,128,128], index: 1, kind: input, shape index: {}]
  %s2 = inlined_call_operand.vmem [shape: f32[8,128], index: 2, kind: input, shape index: {}]
  %s3 = inlined_call_operand.hbm [shape: f32[8,128], index: 3, kind: output, shape index: {}]
  %s4 = sld [smem:[#allocation0]]
  $region26: #{generator_forward.1} parent=0
    _
  %s6 = ssub.s32 1, %s4
  %s7 = scalar_select 0, %s6, %s4
  $region1: #{generator_forward.1} parent=0
    #allocation2 [shape = 'u8[262144]{0}', space=vmem, size = 0x40000, scoped, tag = 'input window, operand 1, single buffered']
    #allocation3 [shape = 's32[1]{0}', space=sflag, size = 0x4, scoped, tag = 'scoped memory for generator_forward.1']
    #allocation4 [shape = 's32[1]{0}', space=sflag, size = 0x4, scoped, tag = 'scoped memory for generator_forward.1']
    #allocation5 [shape = 'u8[4096]{0}', space=vmem, size = 0x1000, scoped, tag = 'output window, operand 0, single buffered']
    %8 = vsyncpa [#allocation3], 0
    %9 = vsyncpa [#allocation4], 0
    // Predicated region
    $region2: #{generator_forward.1} parent=1 // pred_check
      _
    $region3: #{generator_forward.1} parent=1 // pred_check_branch
      %11 = sbr.rel (0) target = $region5
    $region4: #{generator_forward.1} parent=1 // pred_region
      _
    $region5: #{generator_forward.1} parent=1 // pred_fallthru
      _
    // Predicated region
    $region6: #{generator_forward.1} parent=1 // pred_check
      _
    $region7: #{generator_forward.1} parent=1 // pred_check_branch
      %13 = sbr.rel (0) target = $region9
    $region8: #{generator_forward.1} parent=1 // pred_region
      %15 = vsyncadd [#allocation3], 0
      %s16 = sshll.u32 %s1, 4
      %s17 = int_to_ptr.hbm [resolvable:$true] %s16
      %s18 = sshll.u32 [#allocation2], 4
      %s19 = int_to_ptr.vmem [resolvable:$true] %s18
      %24 = dma.hbm_to_vmem [thread:$0]  %s17, 8192, %s19, [#allocation3], 128, 128, 8
    $region9: #{generator_forward.1} parent=1 // pred_fallthru
      _
    // Predicated region
    $region10: #{generator_forward.1} parent=1 // pred_check
      _
    $region11: #{generator_forward.1} parent=1 // pred_check_branch
      %26 = sbr.rel (0) target = $region13
    $region12: #{generator_forward.1} parent=1 // pred_region
      _
    $region13: #{generator_forward.1} parent=1 // pred_fallthru
      _
    // Predicated region
    $region14: #{generator_forward.1} parent=1 // pred_check
      _
    $region15: #{generator_forward.1} parent=1 // pred_check_branch
      %28 = sbr.rel (0) target = $region17
    $region16: #{generator_forward.1} parent=1 // pred_region
      %30 = dma.done [#allocation3], 8192
    $region17: #{generator_forward.1} parent=1 // pred_fallthru
      _
    %v31 = vld [vmem:[%s0] sm:$0xff]
    %v32 = vld [vmem:[#allocation2] sm:$0xff]
    %v33 = vld [vmem:[#allocation2 + $0x8] sm:$0xff]
    %v34 = vld [vmem:[#allocation2 + $0x10] sm:$0xff]
    %v35 = vld [vmem:[#allocation2 + $0x18] sm:$0xff]
    %v36 = vld [vmem:[#allocation2 + $0x20] sm:$0xff]
    %v37 = vld [vmem:[#allocation2 + $0x28] sm:$0xff]
    %v38 = vld [vmem:[#allocation2 + $0x30] sm:$0xff]
    %v39 = vld [vmem:[#allocation2 + $0x38] sm:$0xff]
    %v40 = vld [vmem:[#allocation2 + $0x40] sm:$0xff]
    %v41 = vld [vmem:[#allocation2 + $0x48] sm:$0xff]
    %v42 = vld [vmem:[#allocation2 + $0x50] sm:$0xff]
    %v43 = vld [vmem:[#allocation2 + $0x58] sm:$0xff]
    %v44 = vld [vmem:[#allocation2 + $0x60] sm:$0xff]
    %v45 = vld [vmem:[#allocation2 + $0x68] sm:$0xff]
    %v46 = vld [vmem:[#allocation2 + $0x70] sm:$0xff]
    %v47 = vld [vmem:[#allocation2 + $0x78] sm:$0xff]
    %48 = vmatpush.msra.mxu0 %v47
    %49 = vmatpush.msra.mxu0 %v46
    %50 = vmatpush.msra.mxu0 %v45
    %51 = vmatpush.msra.mxu0 %v44
    %52 = vmatpush.msra.mxu0 %v43
    %53 = vmatpush.msra.mxu0 %v42
    %54 = vmatpush.msra.mxu0 %v41
    %55 = vmatpush.msra.mxu0 %v40
    %56 = vmatpush.msra.mxu0 %v39
    %57 = vmatpush.msra.mxu0 %v38
    %58 = vmatpush.msra.mxu0 %v37
    %59 = vmatpush.msra.mxu0 %v36
    %60 = vmatpush.msra.mxu0 %v35
    %61 = vmatpush.msra.mxu0 %v34
    %62 = vmatpush.msra.mxu0 %v33
    %63 = vmatpush.msra.mxu0 %v32
    %64 = vmatmul.f32.gmra.mxu0 %v31
    %v65 = vpop.f32.mrf.mxu0
    %v66 = vadd.f32 0.0, %v65
    %67 = vdwg.mxu0
    %v68 = vrot.slane %v66, 4
    %v69 = vadd.f32 %v66, %v68
    %v70 = vrot.slane %v69, 2
    %v71 = vadd.f32 %v69, %v70
    %v72 = vrot.slane %v71, 1
    %v73 = vadd.f32 %v71, %v72
    %v74 = vmul.f32 %v73, 0.125
    %v75 = vmul.f32 %v66, %v66
    %v76 = vrot.slane %v75, 4
    %v77 = vadd.f32 %v75, %v76
    %v78 = vrot.slane %v77, 2
    %v79 = vadd.f32 %v77, %v78
    %v80 = vrot.slane %v79, 1
    %v81 = vadd.f32 %v79, %v80
    %v82 = vmul.f32 %v81, 0.125
    %v83 = vmul.f32 %v74, %v74
    %v84 = vsub.f32 %v82, %v83
    %v85 = vmax.f32 %v84, 0.0
    %v86 = vld [vmem:[%s2] sm:$0x1]
    %v87 = vld [vmem:[%s2 + $0x4] sm:$0x1]
    %v88 = vadd.f32 %v85, 1e-05
    %v89 = vrsqrt.pop %v88
    %v90 = vmul.f32 %v89, %v88
    %v91 = vmul.f32 %v90, %v89
    %v92 = vmul.f32 0.5, %v91
    %v93 = vsub.f32 1.5, %v92
    %v94 = vmul.f32 %v89, %v93
    %vm95 = vweird.f32 %v88
    %vm96 = vweird.f32 %v89
    %vm97 = vmor %vm95, %vm96
    %v98 = vsel %vm97, %v89, %v94
    %v99 = vmul.f32 %v86, %v98
    %v100 = vmul.f32 %v74, %v99
    %v101 = vsub.f32 %v87, %v100
    %v102 = vperm.slane %v99, 0
    %v103 = vmul.f32 %v66, %v102
    %v104 = vperm.slane %v101, 0
    %v105 = vadd.f32 %v103, %v104
    %vm106 = vcmp.gt.f32.partialorder %v105, 0.0
    %v107 = vmul.f32 %v105, 0.2
    %v108 = vsel %vm106, %v105, %v107
    %s109 = scalar_lea.vmem [#allocation2], 128
    %v110 = vld [vmem:[%s109] sm:$0xff]
    %v111 = vld [vmem:[%s109 + $0x8] sm:$0xff]
    %v112 = vld [vmem:[%s109 + $0x10] sm:$0xff]
    %v113 = vld [vmem:[%s109 + $0x18] sm:$0xff]
    %v114 = vld [vmem:[%s109 + $0x20] sm:$0xff]
    %v115 = vld [vmem:[%s109 + $0x28] sm:$0xff]
    %v116 = vld [vmem:[%s109 + $0x30] sm:$0xff]
    %v117 = vld [vmem:[%s109 + $0x38] sm:$0xff]
    %v118 = vld [vmem:[%s109 + $0x40] sm:$0xff]
    %v119 = vld [vmem:[%s109 + $0x48] sm:$0xff]
    %v120 = vld [vmem:[%s109 + $0x50] sm:$0xff]
    %v121 = vld [vmem:[%s109 + $0x58] sm:$0xff]
    %v122 = vld [vmem:[%s109 + $0x60] sm:$0xff]
    %v123 = vld [vmem:[%s109 + $0x68] sm:$0xff]
    %v124 = vld [vmem:[%s109 + $0x70] sm:$0xff]
    %v125 = vld [vmem:[%s109 + $0x78] sm:$0xff]
    %126 = vmatpush.msra.mxu0 %v125
    %127 = vmatpush.msra.mxu0 %v124
    %128 = vmatpush.msra.mxu0 %v123
    %129 = vmatpush.msra.mxu0 %v122
    %130 = vmatpush.msra.mxu0 %v121
    %131 = vmatpush.msra.mxu0 %v120
    %132 = vmatpush.msra.mxu0 %v119
    %133 = vmatpush.msra.mxu0 %v118
    %134 = vmatpush.msra.mxu0 %v117
    %135 = vmatpush.msra.mxu0 %v116
    %136 = vmatpush.msra.mxu0 %v115
    %137 = vmatpush.msra.mxu0 %v114
    %138 = vmatpush.msra.mxu0 %v113
    %139 = vmatpush.msra.mxu0 %v112
    %140 = vmatpush.msra.mxu0 %v111
    %141 = vmatpush.msra.mxu0 %v110
    %142 = vmatmul.f32.gmra.mxu0 %v108
    %v143 = vpop.f32.mrf.mxu0
    %v144 = vadd.f32 0.0, %v143
    %145 = vdwg.mxu0
    %v146 = vrot.slane %v144, 4
    %v147 = vadd.f32 %v144, %v146
    %v148 = vrot.slane %v147, 2
    %v149 = vadd.f32 %v147, %v148
    %v150 = vrot.slane %v149, 1
    %v151 = vadd.f32 %v149, %v150
    %v152 = vmul.f32 %v151, 0.125
    %v153 = vmul.f32 %v144, %v144
    %v154 = vrot.slane %v153, 4
    %v155 = vadd.f32 %v153, %v154
    %v156 = vrot.slane %v155, 2
    %v157 = vadd.f32 %v155, %v156
    %v158 = vrot.slane %v157, 1
    %v159 = vadd.f32 %v157, %v158
    %v160 = vmul.f32 %v159, 0.125
    %v161 = vmul.f32 %v152, %v152
    %v162 = vsub.f32 %v160, %v161
    %v163 = vmax.f32 %v162, 0.0
    %v164 = vld [vmem:[%s2 + $0x1] sm:$0x1]
    %v165 = vld [vmem:[%s2 + $0x5] sm:$0x1]
    %v166 = vadd.f32 %v163, 1e-05
    %v167 = vrsqrt.pop %v166
    %v168 = vmul.f32 %v167, %v166
    %v169 = vmul.f32 %v168, %v167
    %v170 = vmul.f32 0.5, %v169
    %v171 = vsub.f32 1.5, %v170
    %v172 = vmul.f32 %v167, %v171
    %vm173 = vweird.f32 %v166
    %vm174 = vweird.f32 %v167
    %vm175 = vmor %vm173, %vm174
    %v176 = vsel %vm175, %v167, %v172
    %v177 = vmul.f32 %v164, %v176
    %v178 = vmul.f32 %v152, %v177
    %v179 = vsub.f32 %v165, %v178
    %v180 = vperm.slane %v177, 0
    %v181 = vmul.f32 %v144, %v180
    %v182 = vperm.slane %v179, 0
    %v183 = vadd.f32 %v181, %v182
    %vm184 = vcmp.gt.f32.partialorder %v183, 0.0
    %v185 = vmul.f32 %v183, 0.2
    %v186 = vsel %vm184, %v183, %v185
    %s187 = scalar_lea.vmem [#allocation2], 256
    %v188 = vld [vmem:[%s187] sm:$0xff]
    %v189 = vld [vmem:[%s187 + $0x8] sm:$0xff]
    %v190 = vld [vmem:[%s187 + $0x10] sm:$0xff]
    %v191 = vld [vmem:[%s187 + $0x18] sm:$0xff]
    %v192 = vld [vmem:[%s187 + $0x20] sm:$0xff]
    %v193 = vld [vmem:[%s187 + $0x28] sm:$0xff]
    %v194 = vld [vmem:[%s187 + $0x30] sm:$0xff]
    %v195 = vld [vmem:[%s187 + $0x38] sm:$0xff]
    %v196 = vld [vmem:[%s187 + $0x40] sm:$0xff]
    %v197 = vld [vmem:[%s187 + $0x48] sm:$0xff]
    %v198 = vld [vmem:[%s187 + $0x50] sm:$0xff]
    %v199 = vld [vmem:[%s187 + $0x58] sm:$0xff]
    %v200 = vld [vmem:[%s187 + $0x60] sm:$0xff]
    %v201 = vld [vmem:[%s187 + $0x68] sm:$0xff]
    %v202 = vld [vmem:[%s187 + $0x70] sm:$0xff]
    %v203 = vld [vmem:[%s187 + $0x78] sm:$0xff]
    %204 = vmatpush.msra.mxu0 %v203
    %205 = vmatpush.msra.mxu0 %v202
    %206 = vmatpush.msra.mxu0 %v201
    %207 = vmatpush.msra.mxu0 %v200
    %208 = vmatpush.msra.mxu0 %v199
    %209 = vmatpush.msra.mxu0 %v198
    %210 = vmatpush.msra.mxu0 %v197
    %211 = vmatpush.msra.mxu0 %v196
    %212 = vmatpush.msra.mxu0 %v195
    %213 = vmatpush.msra.mxu0 %v194
    %214 = vmatpush.msra.mxu0 %v193
    %215 = vmatpush.msra.mxu0 %v192
    %216 = vmatpush.msra.mxu0 %v191
    %217 = vmatpush.msra.mxu0 %v190
    %218 = vmatpush.msra.mxu0 %v189
    %219 = vmatpush.msra.mxu0 %v188
    %220 = vmatmul.f32.gmra.mxu0 %v186
    %v221 = vpop.f32.mrf.mxu0
    %v222 = vadd.f32 0.0, %v221
    %223 = vdwg.mxu0
    %v224 = vrot.slane %v222, 4
    %v225 = vadd.f32 %v222, %v224
    %v226 = vrot.slane %v225, 2
    %v227 = vadd.f32 %v225, %v226
    %v228 = vrot.slane %v227, 1
    %v229 = vadd.f32 %v227, %v228
    %v230 = vmul.f32 %v229, 0.125
    %v231 = vmul.f32 %v222, %v222
    %v232 = vrot.slane %v231, 4
    %v233 = vadd.f32 %v231, %v232
    %v234 = vrot.slane %v233, 2
    %v235 = vadd.f32 %v233, %v234
    %v236 = vrot.slane %v235, 1
    %v237 = vadd.f32 %v235, %v236
    %v238 = vmul.f32 %v237, 0.125
    %v239 = vmul.f32 %v230, %v230
    %v240 = vsub.f32 %v238, %v239
    %v241 = vmax.f32 %v240, 0.0
    %v242 = vld [vmem:[%s2 + $0x2] sm:$0x1]
    %v243 = vld [vmem:[%s2 + $0x6] sm:$0x1]
    %v244 = vadd.f32 %v241, 1e-05
    %v245 = vrsqrt.pop %v244
    %v246 = vmul.f32 %v245, %v244
    %v247 = vmul.f32 %v246, %v245
    %v248 = vmul.f32 0.5, %v247
    %v249 = vsub.f32 1.5, %v248
    %v250 = vmul.f32 %v245, %v249
    %vm251 = vweird.f32 %v244
    %vm252 = vweird.f32 %v245
    %vm253 = vmor %vm251, %vm252
    %v254 = vsel %vm253, %v245, %v250
    %v255 = vmul.f32 %v242, %v254
    %v256 = vmul.f32 %v230, %v255
    %v257 = vsub.f32 %v243, %v256
    %v258 = vperm.slane %v255, 0
    %v259 = vmul.f32 %v222, %v258
    %v260 = vperm.slane %v257, 0
    %v261 = vadd.f32 %v259, %v260
    %vm262 = vcmp.gt.f32.partialorder %v261, 0.0
    %v263 = vmul.f32 %v261, 0.2
    %v264 = vsel %vm262, %v261, %v263
    %s265 = scalar_lea.vmem [#allocation2], 384
    %v266 = vld [vmem:[%s265] sm:$0xff]
    %v267 = vld [vmem:[%s265 + $0x8] sm:$0xff]
    %v268 = vld [vmem:[%s265 + $0x10] sm:$0xff]
    %v269 = vld [vmem:[%s265 + $0x18] sm:$0xff]
    %v270 = vld [vmem:[%s265 + $0x20] sm:$0xff]
    %v271 = vld [vmem:[%s265 + $0x28] sm:$0xff]
    %v272 = vld [vmem:[%s265 + $0x30] sm:$0xff]
    %v273 = vld [vmem:[%s265 + $0x38] sm:$0xff]
    %v274 = vld [vmem:[%s265 + $0x40] sm:$0xff]
    %v275 = vld [vmem:[%s265 + $0x48] sm:$0xff]
    %v276 = vld [vmem:[%s265 + $0x50] sm:$0xff]
    %v277 = vld [vmem:[%s265 + $0x58] sm:$0xff]
    %v278 = vld [vmem:[%s265 + $0x60] sm:$0xff]
    %v279 = vld [vmem:[%s265 + $0x68] sm:$0xff]
    %v280 = vld [vmem:[%s265 + $0x70] sm:$0xff]
    %v281 = vld [vmem:[%s265 + $0x78] sm:$0xff]
    %282 = vmatpush.msra.mxu0 %v281
    %283 = vmatpush.msra.mxu0 %v280
    %284 = vmatpush.msra.mxu0 %v279
    %285 = vmatpush.msra.mxu0 %v278
    %286 = vmatpush.msra.mxu0 %v277
    %287 = vmatpush.msra.mxu0 %v276
    %288 = vmatpush.msra.mxu0 %v275
    %289 = vmatpush.msra.mxu0 %v274
    %290 = vmatpush.msra.mxu0 %v273
    %291 = vmatpush.msra.mxu0 %v272
    %292 = vmatpush.msra.mxu0 %v271
    %293 = vmatpush.msra.mxu0 %v270
    %294 = vmatpush.msra.mxu0 %v269
    %295 = vmatpush.msra.mxu0 %v268
    %296 = vmatpush.msra.mxu0 %v267
    %297 = vmatpush.msra.mxu0 %v266
    %298 = vmatmul.f32.gmra.mxu0 %v264
    %v299 = vpop.f32.mrf.mxu0
    %v300 = vadd.f32 0.0, %v299
    %301 = vdwg.mxu0
    %v302 = vrot.slane %v300, 4
    %v303 = vadd.f32 %v300, %v302
    %v304 = vrot.slane %v303, 2
    %v305 = vadd.f32 %v303, %v304
    %v306 = vrot.slane %v305, 1
    %v307 = vadd.f32 %v305, %v306
    %v308 = vmul.f32 %v307, 0.125
    %v309 = vmul.f32 %v300, %v300
    %v310 = vrot.slane %v309, 4
    %v311 = vadd.f32 %v309, %v310
    %v312 = vrot.slane %v311, 2
    %v313 = vadd.f32 %v311, %v312
    %v314 = vrot.slane %v313, 1
    %v315 = vadd.f32 %v313, %v314
    %v316 = vmul.f32 %v315, 0.125
    %v317 = vmul.f32 %v308, %v308
    %v318 = vsub.f32 %v316, %v317
    %v319 = vmax.f32 %v318, 0.0
    %v320 = vld [vmem:[%s2 + $0x3] sm:$0x1]
    %v321 = vld [vmem:[%s2 + $0x7] sm:$0x1]
    %v322 = vadd.f32 %v319, 1e-05
    %v323 = vrsqrt.pop %v322
    %v324 = vmul.f32 %v323, %v322
    %v325 = vmul.f32 %v324, %v323
    %v326 = vmul.f32 0.5, %v325
    %v327 = vsub.f32 1.5, %v326
    %v328 = vmul.f32 %v323, %v327
    %vm329 = vweird.f32 %v322
    %vm330 = vweird.f32 %v323
    %vm331 = vmor %vm329, %vm330
    %v332 = vsel %vm331, %v323, %v328
    %v333 = vmul.f32 %v320, %v332
    %v334 = vmul.f32 %v308, %v333
    %v335 = vsub.f32 %v321, %v334
    %v336 = vperm.slane %v333, 0
    %v337 = vmul.f32 %v300, %v336
    %v338 = vperm.slane %v335, 0
    %v339 = vadd.f32 %v337, %v338
    %vm340 = vcmp.gt.f32.partialorder %v339, 0.0
    %v341 = vmul.f32 %v339, 0.2
    %v342 = vsel %vm340, %v339, %v341
    %343 = vst [vmem:[#allocation5] sm:$0xff] %v342
    // Predicated region
    $region18: #{generator_forward.1} parent=1 // pred_check
      _
    $region19: #{generator_forward.1} parent=1 // pred_check_branch
      %345 = sbr.rel (0) target = $region21
    $region20: #{generator_forward.1} parent=1 // pred_region
      %347 = vsyncadd [#allocation4], 0
      %s349 = sshll.u32 [#allocation5], 4
      %s350 = int_to_ptr.vmem [resolvable:$true] %s349
      %s351 = sshll.u32 %s3, 4
      %s352 = int_to_ptr.hbm [resolvable:$true] %s351
      %354 = dma.vmem_to_hbm [thread:$0]  %s350, 128, %s352, [#allocation4]
    $region21: #{generator_forward.1} parent=1 // pred_fallthru
      _
    // Predicated region
    $region22: #{generator_forward.1} parent=1 // pred_check
      _
    $region23: #{generator_forward.1} parent=1 // pred_check_branch
      %356 = sbr.rel (0) target = $region25
    $region24: #{generator_forward.1} parent=1 // pred_region
      %358 = dma.done [#allocation4], 128
    $region25: #{generator_forward.1} parent=1 // pred_fallthru
      _
    %359 = vsyncpa [#allocation3], 1
    %360 = vsyncpa [#allocation4], 1

</llo_original>
